<compile_context>
chip_gen: v6e
topology: v6e:2x2x1
jax: 0.10.0
libtpu: 0.0.40
codegen_flags: <defaults>
</compile_context>

<pallas_src>
from dataclasses import dataclass
from functools import partial

import jax
import jax.numpy as jnp
from jax import lax
from jax.experimental import pallas as pl
from jax.experimental.pallas import tpu as pltpu


@dataclass
class Config:
    d_model: int = 768
    debug: bool = False
    layer_norm_eps: float = 1e-5
    d_vocab: int = 50257
    init_range: float = 0.02
    n_ctx: int = 1024
    d_head: int = 64
    d_mlp: int = 3072
    n_heads: int = 12
    n_layers: int = 12


def _round_up(x, m):
    return ((x + m - 1) // m) * m


# ------------------------------ Pallas kernel --------------------------------
def _layernorm_kernel(x_ref, w_ref, b_ref, o_ref, *, eps):
    # x_ref: (TILE_R, D); w_ref / b_ref: (1, D); o_ref: (TILE_R, D)
    x = x_ref[...].astype(jnp.float32)
    mean = jnp.mean(x, axis=-1, keepdims=True)
    xc = x - mean
    var = jnp.mean(xc * xc, axis=-1, keepdims=True)      # biased variance (torch)
    inv = lax.rsqrt(var + eps)                            # EUP rsqrt, no divide
    scale = inv * w_ref[...].astype(jnp.float32)          # fold LN weight into scale
    o_ref[...] = (xc * scale + b_ref[...].astype(jnp.float32)).astype(o_ref.dtype)


# ------------------------------ host wrapper ----------------------------------
def _choose_tile(R, itemsize, block_rows):
    # Cap the row tile so 2x(in)+2x(out) pipeline buffers plus the handful of
    # full-tile f32 temporaries stay comfortably inside a 48 MiB scoped-VMEM
    # budget (valid on v5e/v6e, and under v7x's 64 MiB physical VMEM).
    cap = 1024 if itemsize >= 4 else 2048
    tile = min(block_rows, cap)
    tile = _round_up(tile, 8)
    if R <= tile:
        # Shrink for small inputs so the grid has >= 2 steps (v7x megacore),
        # but never below one (8, 128) register tile of rows.
        if R > 8:
            tile = max(8, _round_up(pl.cdiv(R, 2), 8))
        else:
            tile = 8
    return tile


def layernorm(residual, w, b, *, eps=1e-5, block_rows=1024):
    """residual: (batch, seq, d_model); w, b: (d_model,)."""
    B, S, D = residual.shape
    R = B * S
    x2 = residual.reshape(R, D)

    tile_r = _choose_tile(R, jnp.dtype(residual.dtype).itemsize, block_rows)
    grid = (pl.cdiv(R, tile_r),)   # ragged boundary block is masked by Pallas

    out = pl.pallas_call(
        partial(_layernorm_kernel, eps=eps),
        out_shape=jax.ShapeDtypeStruct((R, D), residual.dtype),
        grid_spec=pltpu.PrefetchScalarGridSpec(
            num_scalar_prefetch=0,
            grid=grid,
            in_specs=[
                pl.BlockSpec((tile_r, D), lambda i: (i, 0)),   # activations stream
                pl.BlockSpec((1, D), lambda i: (0, 0)),        # w stays resident
                pl.BlockSpec((1, D), lambda i: (0, 0)),        # b stays resident
            ],
            out_specs=pl.BlockSpec((tile_r, D), lambda i: (i, 0)),
        ),
        compiler_params=pltpu.CompilerParams(
            dimension_semantics=("parallel",),
            vmem_limit_bytes=48 * 1024 * 1024,   # > v5e/v6e defaults, < v7x physical
        ),
    )(x2, w.reshape(1, D), b.reshape(1, D))

    return out.reshape(B, S, D)


# ------------------------------ pure-JAX reference -----------------------------
def _layernorm_ref(x, w, b, eps):
    x = x.astype(jnp.float32)
    xc = x - jnp.mean(x, axis=-1, keepdims=True)
    scale = jnp.sqrt(jnp.mean(xc * xc, axis=-1, keepdims=True) + eps)
    return xc / scale * w + b


# ------------------------------------ main ------------------------------------
if __name__ == "__main__":
    cfg = Config()
    key = jax.random.PRNGKey(0)
    kx, kw, kb, kx2 = jax.random.split(key, 4)

    # Module init is w=ones, b=zeros; perturb so the test actually exercises w/b.
    w = 1.0 + 0.1 * jax.random.normal(kw, (cfg.d_model,), jnp.float32)
    b = 0.1 * jax.random.normal(kb, (cfg.d_model,), jnp.float32)

    # 1) Small, evenly-divisible case (batch=2, seq=8).
    batch, seq = 2, 8
    residual = jax.random.normal(kx, (batch, seq, cfg.d_model), jnp.float32)
    out = jax.block_until_ready(layernorm(residual, w, b, eps=cfg.layer_norm_eps))
    ref = _layernorm_ref(residual, w, b, cfg.layer_norm_eps)
    assert out.shape == (batch, seq, cfg.d_model)
    assert bool(jnp.all(jnp.isfinite(out)))
    max_err = float(jnp.max(jnp.abs(out - ref)))
    assert max_err < 1e-4, max_err

    # 2) Ragged case (batch*seq not a multiple of the tile) to exercise the
    #    masked boundary block that replaced the pad/slice path.
    batch2, seq2 = 2, 9
    residual2 = jax.random.normal(kx2, (batch2, seq2, cfg.d_model), jnp.float32)
    out2 = jax.block_until_ready(layernorm(residual2, w, b, eps=cfg.layer_norm_eps))
    ref2 = _layernorm_ref(residual2, w, b, cfg.layer_norm_eps)
    assert out2.shape == (batch2, seq2, cfg.d_model)
    assert bool(jnp.all(jnp.isfinite(out2)))
    max_err2 = float(jnp.max(jnp.abs(out2 - ref2)))
    assert max_err2 < 1e-4, max_err2

    print("KERNEL_OK")
</pallas_src>

<mosaic_0001>
module attributes {stable_mosaic.version = 11 : i64} {
  func.func @_layernorm_kernel(%arg0: i32, %arg1: memref<8x768xf32, #tpu.memory_space<vmem>>, %arg2: memref<1x768xf32, #tpu.memory_space<vmem>>, %arg3: memref<1x768xf32, #tpu.memory_space<vmem>>, %arg4: memref<8x768xf32, #tpu.memory_space<vmem>>) attributes {dimension_semantics = [#tpu.dimension_semantics<parallel>], iteration_bounds = array<i64: 2>, scalar_prefetch = 0 : i64, scratch_operands = 0 : i64, tpu.core_type = #tpu.core_type<tc>, window_params = [{transform_indices = @transform_0, window_bounds = array<i64: 8, 768>}, {pipeline_mode = #tpu.pipeline_mode<synchronous>, transform_indices = @transform_1, window_bounds = array<i64: 1, 768>}, {pipeline_mode = #tpu.pipeline_mode<synchronous>, transform_indices = @transform_2, window_bounds = array<i64: 1, 768>}, {transform_indices = @transform_3, window_bounds = array<i64: 8, 768>}]} {
    %c0 = arith.constant 0 : index
    %c0_0 = arith.constant 0 : index
    %0 = vector.load %arg1[%c0, %c0_0] : memref<8x768xf32, #tpu.memory_space<vmem>>, vector<8x768xf32>
    %cst = arith.constant dense<0.000000e+00> : vector<8xf32>
    %1 = vector.multi_reduction <add>, %0, %cst [1] : vector<8x768xf32> to vector<8xf32>
    %2 = vector.shape_cast %1 : vector<8xf32> to vector<8x1xf32>
    %cst_1 = arith.constant 7.680000e+02 : f32
    %3 = vector.broadcast %cst_1 : f32 to vector<8x1xf32>
    %4 = arith.divf %2, %3 : vector<8x1xf32>
    %5 = vector.broadcast %4 : vector<8x1xf32> to vector<8x768xf32>
    %6 = arith.subf %0, %5 : vector<8x768xf32>
    %7 = arith.mulf %6, %6 : vector<8x768xf32>
    %cst_2 = arith.constant dense<0.000000e+00> : vector<8xf32>
    %8 = vector.multi_reduction <add>, %7, %cst_2 [1] : vector<8x768xf32> to vector<8xf32>
    %9 = vector.shape_cast %8 : vector<8xf32> to vector<8x1xf32>
    %cst_3 = arith.constant 7.680000e+02 : f32
    %10 = vector.broadcast %cst_3 : f32 to vector<8x1xf32>
    %11 = arith.divf %9, %10 : vector<8x1xf32>
    %cst_4 = arith.constant 9.99999974E-6 : f32
    %12 = vector.broadcast %cst_4 : f32 to vector<8x1xf32>
    %13 = arith.addf %11, %12 : vector<8x1xf32>
    %14 = math.rsqrt %13 : vector<8x1xf32>
    %c0_5 = arith.constant 0 : index
    %c0_6 = arith.constant 0 : index
    %15 = vector.load %arg2[%c0_5, %c0_6] : memref<1x768xf32, #tpu.memory_space<vmem>>, vector<1x768xf32>
    %16 = vector.broadcast %14 : vector<8x1xf32> to vector<8x768xf32>
    %17 = vector.broadcast %15 : vector<1x768xf32> to vector<8x768xf32>
    %18 = arith.mulf %16, %17 : vector<8x768xf32>
    %19 = arith.mulf %6, %18 : vector<8x768xf32>
    %c0_7 = arith.constant 0 : index
    %c0_8 = arith.constant 0 : index
    %20 = vector.load %arg3[%c0_7, %c0_8] : memref<1x768xf32, #tpu.memory_space<vmem>>, vector<1x768xf32>
    %21 = vector.broadcast %20 : vector<1x768xf32> to vector<8x768xf32>
    %22 = arith.addf %19, %21 : vector<8x768xf32>
    %c0_9 = arith.constant 0 : index
    %c0_10 = arith.constant 0 : index
    %23 = vector.load %arg4[%c0_9, %c0_10] : memref<8x768xf32, #tpu.memory_space<vmem>>, vector<8x768xf32>
    tpu.vector_store %arg4[%c0_9, %c0_10], %22 {strides = array<i32>} : memref<8x768xf32, #tpu.memory_space<vmem>>, vector<8x768xf32>,
    return
  }
  func.func @transform_0(%arg0: i32) -> (i32, i32) {
    %c0_i32 = arith.constant 0 : i32
    %c0_i32_0 = arith.constant 0 : i32
    return %arg0, %c0_i32 : i32, i32
  }
  func.func @transform_1(%arg0: i32) -> (i32, i32) {
    %c0_i32 = arith.constant 0 : i32
    %c0_i32_0 = arith.constant 0 : i32
    %c0_i32_1 = arith.constant 0 : i32
    return %c0_i32, %c0_i32_0 : i32, i32
  }
  func.func @transform_2(%arg0: i32) -> (i32, i32) {
    %c0_i32 = arith.constant 0 : i32
    %c0_i32_0 = arith.constant 0 : i32
    %c0_i32_1 = arith.constant 0 : i32
    return %c0_i32, %c0_i32_0 : i32, i32
  }
  func.func @transform_3(%arg0: i32) -> (i32, i32) {
    %c0_i32 = arith.constant 0 : i32
    %c0_i32_0 = arith.constant 0 : i32
    return %arg0, %c0_i32 : i32, i32
  }
}

</mosaic_0001>

<llo_original>
// kernel: tpu_custom_call.1
$region0: #{tpu_custom_call.1}
  #allocation0 [shape = 'u32[]', space=smem, size = 0x4, offset = 0x4, fixed_abs, tag = 'smem constant byte address 0x4 - core index']
  #allocation1 [shape = 'u32[144,128]{1,0:T(1,128)}', space=vmem, size = 0x12000, scoped, tag = 'internal scratch']
  %s0 = inlined_call_operand.hbm [shape: f32[16,768], index: 0, kind: input, shape index: {}]
  %s1 = inlined_call_operand.hbm [shape: f32[1,768], index: 1, kind: input, shape index: {}]
  %s2 = inlined_call_operand.hbm [shape: f32[1,768], index: 2, kind: input, shape index: {}]
  %s3 = inlined_call_operand.hbm [shape: f32[16,768], index: 3, kind: output, shape index: {}]
  %s4 = sld [smem:[#allocation0]]
  $region57: #{tpu_custom_call.1} parent=0
    _
  %s6 = ssub.s32 1, %s4
  %s7 = scalar_select 0, %s6, %s4
  $region1: #{tpu_custom_call.1} parent=0
    #allocation2 [shape = 'u8[49152]{0}', space=vmem, size = 0xc000, scoped, tag = 'input window, operand 0']
    #allocation3 [shape = 's32[2]{0}', space=sflag, size = 0x8, scoped, tag = 'scoped memory for tpu_custom_call.1']
    #allocation4 [shape = 's32[2]{0}', space=sflag, size = 0x8, scoped, tag = 'scoped memory for tpu_custom_call.1']
    #allocation5 [shape = 'u8[3072]{0}', space=vmem, size = 0xc00, scoped, tag = 'input window, operand 1, single buffered']
    #allocation6 [shape = 's32[1]{0}', space=sflag, size = 0x4, scoped, tag = 'scoped memory for tpu_custom_call.1']
    #allocation7 [shape = 'u8[3072]{0}', space=vmem, size = 0xc00, scoped, tag = 'input window, operand 2, single buffered']
    #allocation8 [shape = 'u8[49152]{0}', space=vmem, size = 0xc000, scoped, tag = 'output window, operand 0']
    %8 = vsyncpa [#allocation3], 0
    %s9 = scalar_lea.sflag [#allocation3], 1
    %10 = vsyncpa %s9, 0
    %11 = vsyncpa [#allocation6], 0
    %12 = vsyncpa [#allocation4], 0
    %s13 = scalar_lea.sflag [#allocation4], 1
    %14 = vsyncpa %s13, 0
    loop: start=0, step=1, limit=4
    $region2: #{tpu_custom_call.1} parent=1 // loop_pre_header
      _
    $region3: #{tpu_custom_call.1} parent=1 // loop_header
      %s16 = sphi 0, %s20
      %p17 = scmp.ge.s32.totalorder %s16, 4
      %s26 = sphi 0, %s28
      %s29 = sphi 0, %s26
      %s30 = sphi 0, %s29
      %s46 = sphi 0, %s30
      %s50 = sphi 0, %s50
      %s52 = sphi 0, %s50
      %s53 = sphi 0, %s52
      %s67 = sphi 0, %s53
      %s71 = sphi 0, %s71
      %s73 = sphi 0, %s71
      %s74 = sphi 0, %s73
      %s88 = sphi 0, %s74
      %s94 = sphi 0, %s96
      %s97 = sphi 0, %s94
      %s98 = sphi 0, %s97
      %s114 = sphi 0, %s98
    $region4: #{tpu_custom_call.1} parent=1 // loop_header_branch
      %19 = sbr.rel (%p17) target = $region8
    $region5: #{tpu_custom_call.1} parent=1 // loop_body
      %s21 = ssub.s32 %s16, 1
      %s22 = ssub.s32 %s16, 2
      %s23 = sadd.s32 %s16, 1
      %s24 = ssub.s32 %s16, %s23
      %p25 = scmp.eq.s32.totalorder %s24, 0
      %s27 = sadd.s32 %s26, 1
      %s28 = scalar_select %p25, %s26, %s27
      %p31 = pneg %p25
      %p32 = scmp.eq.s32.totalorder %s16, 1
      %p33 = por %p31, %p32
      %p34 = scmp.ne.s32.totalorder %s26, %s29
      %p35 = scmp.eq.s32.totalorder %s16, 0
      %p36 = por %p34, %p35
      %p37 = scmp.ne.s32.totalorder %s26, %s29
      %p38 = scmp.eq.s32.totalorder %s21, 1
      %p39 = por %p37, %p38
      %p40 = scmp.ne.s32.totalorder %s29, %s30
      %p41 = scmp.eq.s32.totalorder %s21, 0
      %p42 = por %p40, %p41
      %p43 = scmp.ne.s32.totalorder %s29, %s30
      %p44 = scmp.eq.s32.totalorder %s22, 1
      %p45 = por %p43, %p44
      %p47 = scmp.ne.s32.totalorder %s30, %s46
      %p48 = scmp.eq.s32.totalorder %s22, 0
      %p49 = por %p47, %p48
      %s51 = sadd.s32 %s50, 1
      %p54 = scmp.eq.s32.totalorder %s16, 1
      %p55 = scmp.ne.s32.totalorder %s50, %s52
      %p56 = scmp.eq.s32.totalorder %s16, 0
      %p57 = por %p55, %p56
      %p58 = scmp.ne.s32.totalorder %s50, %s52
      %p59 = scmp.eq.s32.totalorder %s21, 1
      %p60 = por %p58, %p59
      %p61 = scmp.ne.s32.totalorder %s52, %s53
      %p62 = scmp.eq.s32.totalorder %s21, 0
      %p63 = por %p61, %p62
      %p64 = scmp.ne.s32.totalorder %s52, %s53
      %p65 = scmp.eq.s32.totalorder %s22, 1
      %p66 = por %p64, %p65
      %p68 = scmp.ne.s32.totalorder %s53, %s67
      %p69 = scmp.eq.s32.totalorder %s22, 0
      %p70 = por %p68, %p69
      %s72 = sadd.s32 %s71, 1
      %p75 = scmp.eq.s32.totalorder %s16, 1
      %p76 = scmp.ne.s32.totalorder %s71, %s73
      %p77 = scmp.eq.s32.totalorder %s16, 0
      %p78 = por %p76, %p77
      %p79 = scmp.ne.s32.totalorder %s71, %s73
      %p80 = scmp.eq.s32.totalorder %s21, 1
      %p81 = por %p79, %p80
      %p82 = scmp.ne.s32.totalorder %s73, %s74
      %p83 = scmp.eq.s32.totalorder %s21, 0
      %p84 = por %p82, %p83
      %p85 = scmp.ne.s32.totalorder %s73, %s74
      %p86 = scmp.eq.s32.totalorder %s22, 1
      %p87 = por %p85, %p86
      %p89 = scmp.ne.s32.totalorder %s74, %s88
      %p90 = scmp.eq.s32.totalorder %s22, 0
      %p91 = por %p89, %p90
      %s92 = ssub.s32 %s16, %s23
      %p93 = scmp.eq.s32.totalorder %s92, 0
      %s95 = sadd.s32 %s94, 1
      %s96 = scalar_select %p93, %s94, %s95
      %p99 = pneg %p93
      %p100 = scmp.eq.s32.totalorder %s16, 1
      %p101 = por %p99, %p100
      %p102 = scmp.ne.s32.totalorder %s94, %s97
      %p103 = scmp.eq.s32.totalorder %s16, 0
      %p104 = por %p102, %p103
      %p105 = scmp.ne.s32.totalorder %s94, %s97
      %p106 = scmp.eq.s32.totalorder %s21, 1
      %p107 = por %p105, %p106
      %p108 = scmp.ne.s32.totalorder %s97, %s98
      %p109 = scmp.eq.s32.totalorder %s21, 0
      %p110 = por %p108, %p109
      %p111 = scmp.ne.s32.totalorder %s97, %s98
      %p112 = scmp.eq.s32.totalorder %s22, 1
      %p113 = por %p111, %p112
      %p115 = scmp.ne.s32.totalorder %s98, %s114
      %p116 = scmp.eq.s32.totalorder %s22, 0
      %p117 = por %p115, %p116
      %p118 = scmp.le.s32.totalorder 1, %s16
      %p119 = scmp.lt.s32.totalorder %s16, 3
      %p120 = pnand %p118, %p119
      %p121 = pneg %p120
      // Predicated region
      $region9: #{tpu_custom_call.1} parent=5 // pred_check
        _
      $region10: #{tpu_custom_call.1} parent=5 // pred_check_branch
        %123 = sbr.rel (%p120) target = $region12
      $region11: #{tpu_custom_call.1} parent=5 // pred_region
        %s124 = ssub.s32 %s16, 1
        // Predicated region
        $region13: #{tpu_custom_call.1} parent=11 // pred_check
          %p125 = pneg %p63
        $region14: #{tpu_custom_call.1} parent=11 // pred_check_branch
          %127 = sbr.rel (%p125) target = $region16
        $region15: #{tpu_custom_call.1} parent=11 // pred_region
          %s129 = ssub.s32 96, 96
          %130 = vsyncadd [#allocation6], %s129
          %s132 = sshll.u32 [#allocation5], 4
          %s133 = int_to_ptr.vmem [resolvable:$true] %s132
          %135 = dma.hbm_to_vmem [thread:$0]  %s1, 96, %s133, [#allocation6]
        $region16: #{tpu_custom_call.1} parent=11 // pred_fallthru
          _
        // Predicated region
        $region17: #{tpu_custom_call.1} parent=11 // pred_check
          %p136 = pneg %p84
        $region18: #{tpu_custom_call.1} parent=11 // pred_check_branch
          %138 = sbr.rel (%p136) target = $region20
        $region19: #{tpu_custom_call.1} parent=11 // pred_region
          %s140 = ssub.s32 96, 96
          %141 = vsyncadd [#allocation6], %s140
          %s143 = sshll.u32 [#allocation7], 4
          %s144 = int_to_ptr.vmem [resolvable:$true] %s143
          %146 = dma.hbm_to_vmem [thread:$0]  %s2, 96, %s144, [#allocation6]
        $region20: #{tpu_custom_call.1} parent=11 // pred_fallthru
          _
      $region12: #{tpu_custom_call.1} parent=5 // pred_fallthru
        _
      %p147 = scmp.lt.s32.totalorder %s16, 2
      // Predicated region
      $region21: #{tpu_custom_call.1} parent=5 // pred_check
        %p148 = pneg %p147
      $region22: #{tpu_custom_call.1} parent=5 // pred_check_branch
        %150 = sbr.rel (%p148) target = $region24
      $region23: #{tpu_custom_call.1} parent=5 // pred_region
        // Predicated region
        $region25: #{tpu_custom_call.1} parent=23 // pred_check
          %p151 = pneg %p36
        $region26: #{tpu_custom_call.1} parent=23 // pred_check_branch
          %153 = sbr.rel (%p151) target = $region28
        $region27: #{tpu_custom_call.1} parent=23 // pred_region
          %s154 = sand.u32 %s26, 1
          %s155 = scalar_lea.sflag [#allocation3], %s154
          %s156 = sand.u32 %s26, 1
          %s157 = smul.addr %s156, 48
          %s158 = scalar_lea.vmem [#allocation2], %s157
          %s160 = ssub.s32 768, 768
          %161 = vsyncadd %s155, %s160
          %s162 = smul.addr %s16, 6
          %s163 = smul.addr %s162, 128
          %s164 = scalar_lea.hbm %s0, %s163
          %s166 = sshll.u32 %s158, 4
          %s167 = int_to_ptr.vmem [resolvable:$true] %s166
          %169 = dma.hbm_to_vmem [thread:$0]  %s164, 768, %s167, %s155
        $region28: #{tpu_custom_call.1} parent=23 // pred_fallthru
          _
      $region24: #{tpu_custom_call.1} parent=5 // pred_fallthru
        _
      %p170 = scmp.le.s32.totalorder 1, %s16
      %p171 = scmp.lt.s32.totalorder %s16, 3
      %p172 = pnand %p170, %p171
      %p173 = pneg %p172
      // Predicated region
      $region29: #{tpu_custom_call.1} parent=5 // pred_check
        _
      $region30: #{tpu_custom_call.1} parent=5 // pred_check_branch
        %175 = sbr.rel (%p172) target = $region32
      $region31: #{tpu_custom_call.1} parent=5 // pred_region
        %s176 = ssub.s32 %s16, 1
        %s177 = sand.u32 %s29, 1
        %s178 = scalar_lea.sflag [#allocation3], %s177
        %s179 = sand.u32 %s29, 1
        %s180 = smul.addr %s179, 48
        %s181 = scalar_lea.vmem [#allocation2], %s180
        // Predicated region
        $region33: #{tpu_custom_call.1} parent=31 // pred_check
          %p182 = pneg %p42
        $region34: #{tpu_custom_call.1} parent=31 // pred_check_branch
          %184 = sbr.rel (%p182) target = $region36
        $region35: #{tpu_custom_call.1} parent=31 // pred_region
          %185 = dma.done %s178, 768
        $region36: #{tpu_custom_call.1} parent=31 // pred_fallthru
          _
        // Predicated region
        $region37: #{tpu_custom_call.1} parent=31 // pred_check
          %p186 = pneg %p63
        $region38: #{tpu_custom_call.1} parent=31 // pred_check_branch
          %188 = sbr.rel (%p186) target = $region40
        $region39: #{tpu_custom_call.1} parent=31 // pred_region
          %189 = dma.done [#allocation6], 96
        $region40: #{tpu_custom_call.1} parent=31 // pred_fallthru
          _
        // Predicated region
        $region41: #{tpu_custom_call.1} parent=31 // pred_check
          %p190 = pneg %p84
        $region42: #{tpu_custom_call.1} parent=31 // pred_check_branch
          %192 = sbr.rel (%p190) target = $region44
        $region43: #{tpu_custom_call.1} parent=31 // pred_region
          %193 = dma.done [#allocation6], 96
        $region44: #{tpu_custom_call.1} parent=31 // pred_fallthru
          _
        %s194 = sand.u32 %s29, 1
        %s195 = scalar_lea.sflag [#allocation3], %s194
        %s196 = sand.u32 %s29, 1
        %s197 = smul.addr %s196, 48
        %s198 = scalar_lea.vmem [#allocation2], %s197
        %p199 = pneg %p42
        %p200 = pneg %p39
        %p201 = pneg %p63
        %p202 = pneg %p60
        %p203 = pneg %p84
        %p204 = pneg %p81
        %p205 = pneg %p110
        %p206 = pneg %p107
        %s207 = sand.u32 %s97, 1
        %s208 = scalar_lea.sflag [#allocation4], %s207
        %s209 = sand.u32 %s97, 1
        %s210 = smul.addr %s209, 48
        %s211 = scalar_lea.vmem [#allocation8], %s210
        %v212 = vld [vmem:[%s181] sm:$0xff]
        %v213 = vld [vmem:[%s181 + $0x8] sm:$0xff]
        %v214 = vld [vmem:[%s181 + $0x10] sm:$0xff]
        %v215 = vld [vmem:[%s181 + $0x18] sm:$0xff]
        %v216 = vld [vmem:[%s181 + $0x20] sm:$0xff]
        %v217 = vld [vmem:[%s181 + $0x28] sm:$0xff]
        %v218 = vadd.f32 %v212, %v213
        %v219 = vadd.f32 %v218, %v214
        %v220 = vadd.f32 %v219, %v215
        %v221 = vadd.f32 %v220, %v216
        %v222 = vadd.f32 %v221, %v217
        %223 = vadd.xlane.f32.xlu0 %v222
        %v224 = vpop.xlane.xlu0 %223
        %v225 = vrcp.pop 768.0
        %v226 = vmul.f32 %v224, %v225
        %v227 = vsub.f32 %v212, %v226
        %v228 = vsub.f32 %v213, %v226
        %v229 = vsub.f32 %v214, %v226
        %v230 = vsub.f32 %v215, %v226
        %v231 = vsub.f32 %v216, %v226
        %v232 = vsub.f32 %v217, %v226
        %v233 = vmul.f32 %v227, %v227
        %v234 = vmul.f32 %v228, %v228
        %v235 = vmul.f32 %v229, %v229
        %v236 = vmul.f32 %v230, %v230
        %v237 = vmul.f32 %v231, %v231
        %v238 = vmul.f32 %v232, %v232
        %v239 = vadd.f32 %v233, %v234
        %v240 = vadd.f32 %v239, %v235
        %v241 = vadd.f32 %v240, %v236
        %v242 = vadd.f32 %v241, %v237
        %v243 = vadd.f32 %v242, %v238
        %244 = vadd.xlane.f32.xlu0 %v243
        %v245 = vpop.xlane.xlu0 %244
        %v246 = vmul.f32 %v245, %v225
        %v247 = vadd.f32 %v246, 1e-05
        %v248 = vrsqrt.pop %v247
        %v249 = vld [vmem:[#allocation5] sm:$0x3f]
        %v251 = vlaneseq
        %v252 = vshrl.u32 %v251, 7
        %v253 = vsub.s32 0, %v252
        %v254 = vrot.slane %v249, %v253
        %v255 = vlaneseq
        %v256 = vshrl.u32 %v255, 7
        %v257 = vsub.s32 1, %v256
        %v258 = vrot.slane %v249, %v257
        %v259 = vlaneseq
        %v260 = vshrl.u32 %v259, 7
        %v261 = vsub.s32 2, %v260
        %v262 = vrot.slane %v249, %v261
        %v263 = vlaneseq
        %v264 = vshrl.u32 %v263, 7
        %v265 = vsub.s32 3, %v264
        %v266 = vrot.slane %v249, %v265
        %v267 = vlaneseq
        %v268 = vshrl.u32 %v267, 7
        %v269 = vsub.s32 4, %v268
        %v270 = vrot.slane %v249, %v269
        %v271 = vlaneseq
        %v272 = vshrl.u32 %v271, 7
        %v273 = vsub.s32 5, %v272
        %v274 = vrot.slane %v249, %v273
        %v281 = vmul.f32 %v248, %v254
        %v282 = vmul.f32 %v248, %v258
        %v283 = vmul.f32 %v248, %v262
        %v284 = vmul.f32 %v248, %v266
        %v285 = vmul.f32 %v248, %v270
        %v286 = vmul.f32 %v248, %v274
        %v287 = vmul.f32 %v227, %v281
        %v288 = vmul.f32 %v228, %v282
        %v289 = vmul.f32 %v229, %v283
        %v290 = vmul.f32 %v230, %v284
        %v291 = vmul.f32 %v231, %v285
        %v292 = vmul.f32 %v232, %v286
        %v293 = vld [vmem:[#allocation7] sm:$0x3f]
        %v295 = vlaneseq
        %v296 = vshrl.u32 %v295, 7
        %v297 = vsub.s32 0, %v296
        %v298 = vrot.slane %v293, %v297
        %v299 = vlaneseq
        %v300 = vshrl.u32 %v299, 7
        %v301 = vsub.s32 1, %v300
        %v302 = vrot.slane %v293, %v301
        %v303 = vlaneseq
        %v304 = vshrl.u32 %v303, 7
        %v305 = vsub.s32 2, %v304
        %v306 = vrot.slane %v293, %v305
        %v307 = vlaneseq
        %v308 = vshrl.u32 %v307, 7
        %v309 = vsub.s32 3, %v308
        %v310 = vrot.slane %v293, %v309
        %v311 = vlaneseq
        %v312 = vshrl.u32 %v311, 7
        %v313 = vsub.s32 4, %v312
        %v314 = vrot.slane %v293, %v313
        %v315 = vlaneseq
        %v316 = vshrl.u32 %v315, 7
        %v317 = vsub.s32 5, %v316
        %v318 = vrot.slane %v293, %v317
        %v325 = vadd.f32 %v287, %v298
        %v326 = vadd.f32 %v288, %v302
        %v327 = vadd.f32 %v289, %v306
        %v328 = vadd.f32 %v290, %v310
        %v329 = vadd.f32 %v291, %v314
        %v330 = vadd.f32 %v292, %v318
        %331 = vst [vmem:[%s211] sm:$0xff] %v325
        %332 = vst [vmem:[%s211 + $0x8] sm:$0xff] %v326
        %333 = vst [vmem:[%s211 + $0x10] sm:$0xff] %v327
        %334 = vst [vmem:[%s211 + $0x18] sm:$0xff] %v328
        %335 = vst [vmem:[%s211 + $0x20] sm:$0xff] %v329
        %336 = vst [vmem:[%s211 + $0x28] sm:$0xff] %v330
        %s337 = sand.u32 %s97, 1
        %s338 = scalar_lea.sflag [#allocation4], %s337
        %s339 = sand.u32 %s97, 1
        %s340 = smul.addr %s339, 48
        %s341 = scalar_lea.vmem [#allocation8], %s340
        // Predicated region
        $region45: #{tpu_custom_call.1} parent=31 // pred_check
          %p342 = pneg %p107
        $region46: #{tpu_custom_call.1} parent=31 // pred_check_branch
          %344 = sbr.rel (%p342) target = $region48
        $region47: #{tpu_custom_call.1} parent=31 // pred_region
          %s346 = ssub.s32 768, 768
          %347 = vsyncadd %s338, %s346
          %s348 = smul.addr %s21, 6
          %s349 = smul.addr %s348, 128
          %s350 = scalar_lea.hbm %s3, %s349
          %s352 = sshll.u32 %s341, 4
          %s353 = int_to_ptr.vmem [resolvable:$true] %s352
          %355 = dma.vmem_to_hbm [thread:$0]  %s353, 768, %s350, %s338
        $region48: #{tpu_custom_call.1} parent=31 // pred_fallthru
          _
      $region32: #{tpu_custom_call.1} parent=5 // pred_fallthru
        _
      %p356 = scmp.le.s32.totalorder 2, %s16
      // Predicated region
      $region49: #{tpu_custom_call.1} parent=5 // pred_check
        %p357 = pneg %p356
      $region50: #{tpu_custom_call.1} parent=5 // pred_check_branch
        %359 = sbr.rel (%p357) target = $region52
      $region51: #{tpu_custom_call.1} parent=5 // pred_region
        %s360 = ssub.s32 %s16, 2
        // Predicated region
        $region53: #{tpu_custom_call.1} parent=51 // pred_check
          %p361 = pneg %p113
        $region54: #{tpu_custom_call.1} parent=51 // pred_check_branch
          %363 = sbr.rel (%p361) target = $region56
        $region55: #{tpu_custom_call.1} parent=51 // pred_region
          %s364 = sand.u32 %s98, 1
          %s365 = scalar_lea.sflag [#allocation4], %s364
          %s366 = sand.u32 %s98, 1
          %s367 = smul.addr %s366, 48
          %s368 = scalar_lea.vmem [#allocation8], %s367
          %369 = dma.done %s365, 768
        $region56: #{tpu_custom_call.1} parent=51 // pred_fallthru
          _
      $region52: #{tpu_custom_call.1} parent=5 // pred_fallthru
        _
    $region6: #{tpu_custom_call.1} parent=1 // loop_footer
      %s20 = sadd.s32 1, %s16
    $region7: #{tpu_custom_call.1} parent=1 // loop_footer_branch
      %15 = sbr.rel target = $region3
    $region8: #{tpu_custom_call.1} parent=1 // loop_exit
      _
    %370 = vsyncpa [#allocation3], 1
    %s371 = scalar_lea.sflag [#allocation3], 1
    %372 = vsyncpa %s371, 1
    %373 = vsyncpa [#allocation6], 1
    %374 = vsyncpa [#allocation4], 1
    %s375 = scalar_lea.sflag [#allocation4], 1
    %376 = vsyncpa %s375, 1

</llo_original>
